<compile_context>
chip_gen: v6e
topology: v6e:2x2x1
jax: 0.10.0
libtpu: 0.0.40
codegen_flags: <defaults>
</compile_context>

<pallas_src>
import itertools

import numpy as np
import jax
import jax.numpy as jnp
from jax.experimental import pallas as pl
from jax.experimental.pallas import tpu as pltpu


def _round_up(x, m):
    return (x + m - 1) // m * m


def _make_params():
    # Deterministic parameter setup, exactly as in the PyTorch module __init__.
    tensor = np.zeros((8, 8, 8, 8), dtype=np.float32)
    for x, y, u, v in itertools.product(range(8), repeat=4):
        tensor[x, y, u, v] = (np.cos((2 * x + 1) * u * np.pi / 16)
                              * np.cos((2 * y + 1) * v * np.pi / 16))
    alpha = np.array([1.0 / np.sqrt(2)] + [1] * 7)
    scale = (np.outer(alpha, alpha) * 0.25).astype(np.float32)
    return tensor, scale


def _dct8x8_kernel(x_ref, t_ref, o_ref):
    # x_ref: (TM, 128)  -- two flattened 8x8 pixel blocks per 128-lane row
    # t_ref: (128, 128) -- block-diagonal (scale-folded) DCT basis, VMEM resident
    centered = x_ref[...] - 128.0
    o_ref[...] = jnp.dot(centered, t_ref[...],
                         preferred_element_type=jnp.float32)


def _dct8x8_packed(x_rows, t_bd, block_rows):
    """x_rows: (rows, 128) f32, two 8x8 blocks per row. Returns (rows, 128) f32."""
    rows = x_rows.shape[0]

    # Tile selection:
    #   - aim for >=4 grid steps so the "parallel" axis shards across v7x's
    #     two TensorCores and the pipeline has depth everywhere,
    #   - but never below 256 rows (128 KiB tiles) so per-step overhead
    #     (~0.35 us) stays negligible for mid-size inputs,
    #   - and never above block_rows (default 4096 rows = 2 MiB per buffer;
    #     double-buffered in+out = 8 MiB + 64 KiB basis, under every
    #     generation's scoped-VMEM default: 16 MiB v5e, 32 MiB v6e/v7x).
    target = _round_up(pl.cdiv(rows, 4), 8)
    tm = min(block_rows, max(256, target))
    tm = min(tm, _round_up(rows, 8))
    grid = (pl.cdiv(rows, tm),)

    return pl.pallas_call(
        _dct8x8_kernel,
        out_shape=jax.ShapeDtypeStruct((rows, 128), jnp.float32),
        grid=grid,
        in_specs=[
            pl.BlockSpec((tm, 128), lambda i: (i, 0)),    # packed pixel blocks
            pl.BlockSpec((128, 128), lambda i: (0, 0)),   # DCT basis (resident)
        ],
        out_specs=pl.BlockSpec((tm, 128), lambda i: (i, 0)),
        compiler_params=pltpu.CompilerParams(
            dimension_semantics=("parallel",),
        ),
        cost_estimate=pl.CostEstimate(
            flops=2 * rows * 128 * 128,
            transcendentals=0,
            bytes_accessed=(2 * rows * 128 + 128 * 128) * 4,
        ),
    )(x_rows, t_bd)


class DCT8x8:
    """JPEG forward 8x8 DCT. Mirrors the PyTorch dct_8x8 module's forward."""

    def __init__(self, block_rows=4096):
        tensor, scale = _make_params()
        self.tensor = tensor          # (8,8,8,8) numpy, same as module param
        self.scale = scale            # (8,8)     numpy, same as module param
        # Fold the per-frequency scale into the basis: T[xy,uv] = tensor[x,y,u,v]*scale[u,v]
        t_scaled = (tensor.reshape(64, 64) * scale.reshape(1, 64)).astype(np.float32)
        # Block-diagonal copy so two 8x8 blocks ride one lane-dense 128-wide row.
        t_bd = np.kron(np.eye(2, dtype=np.float32), t_scaled).astype(np.float32)
        # Built once on the host; constants reused across every call.
        self._t_scaled = jnp.asarray(t_scaled)   # (64, 64)  for the odd-B tail
        self._t_bd = jnp.asarray(t_bd)           # (128, 128) kernel constant
        self.block_rows = int(block_rows)

    def __call__(self, image):
        B, H, W = image.shape
        assert (H, W) == (8, 8), "dct_8x8 expects 8x8 blocks"
        image = image.astype(jnp.float32)

        b_even = B - (B % 2)
        out_main = None
        if b_even > 0:
            if b_even == B:
                x = image.reshape(B // 2, 128)               # zero-copy row-major glue
            else:
                x = image[:b_even].reshape(b_even // 2, 128)  # leading-dim slice (odd B)
            out_main = _dct8x8_packed(x, self._t_bd, self.block_rows)
            out_main = out_main.reshape(b_even, 8, 8)
        if b_even == B:
            return out_main

        # Odd B: transform the single trailing block outside the kernel instead of
        # jnp.pad-copying the whole input in front of a bandwidth-bound kernel.
        tail = ((image[b_even:].reshape(B - b_even, 64) - 128.0) @ self._t_scaled)
        tail = tail.reshape(B - b_even, 8, 8)
        if out_main is None:
            return tail
        return jnp.concatenate([out_main, tail], axis=0)


if __name__ == "__main__":
    dct = DCT8x8()   # production defaults (block_rows=4096); no demo-only tiny tiles

    key = jax.random.PRNGKey(0)
    # 2049 8x8 pixel blocks: odd on purpose so the run exercises both the
    # multi-step "parallel" packed-kernel grid (4 steps) and the trailing-block path.
    B = 2049
    image = jax.random.uniform(key, (B, 8, 8), dtype=jnp.float32) * 255.0

    out = jax.block_until_ready(dct(image))
    assert out.shape == (B, 8, 8), out.shape

    # Float64 numpy reference of the PyTorch forward.
    img64 = np.asarray(image, dtype=np.float64)
    ref = (dct.scale.astype(np.float64)
           * np.tensordot(img64 - 128.0, dct.tensor.astype(np.float64), axes=2))
    np.testing.assert_allclose(np.asarray(out), ref, rtol=1e-4, atol=1e-2)

    print("KERNEL_OK")
</pallas_src>

<mosaic_0001>
module attributes {stable_mosaic.version = 11 : i64} {
  func.func @_dct8x8_kernel(%arg0: i32, %arg1: memref<256x128xf32, #tpu.memory_space<vmem>>, %arg2: memref<128x128xf32, #tpu.memory_space<vmem>>, %arg3: memref<256x128xf32, #tpu.memory_space<vmem>>) attributes {dimension_semantics = [#tpu.dimension_semantics<parallel>], iteration_bounds = array<i64: 4>, scalar_prefetch = 0 : i64, scratch_operands = 0 : i64, tpu.core_type = #tpu.core_type<tc>, window_params = [{transform_indices = @transform_0, window_bounds = array<i64: 256, 128>}, {pipeline_mode = #tpu.pipeline_mode<synchronous>, transform_indices = @transform_1, window_bounds = array<i64: 128, 128>}, {transform_indices = @transform_2, window_bounds = array<i64: 256, 128>}]} {
    %c0 = arith.constant 0 : index
    %c0_0 = arith.constant 0 : index
    %0 = vector.load %arg1[%c0, %c0_0] : memref<256x128xf32, #tpu.memory_space<vmem>>, vector<256x128xf32>
    %cst = arith.constant 1.280000e+02 : f32
    %1 = vector.broadcast %cst : f32 to vector<256x128xf32>
    %2 = arith.subf %0, %1 : vector<256x128xf32>
    %c0_1 = arith.constant 0 : index
    %c0_2 = arith.constant 0 : index
    %3 = vector.load %arg2[%c0_1, %c0_2] : memref<128x128xf32, #tpu.memory_space<vmem>>, vector<128x128xf32>
    %cst_3 = arith.constant dense<0.000000e+00> : vector<256x128xf32>
    %4 = tpu.matmul %2, %3, %cst_3 {dimension_numbers = #tpu.dot_dimension_numbers<[1], [0], [0], [1], [0, 0, 1, 1], [], []>} : vector<256x128xf32>, vector<128x128xf32>, vector<256x128xf32> -> vector<256x128xf32>
    %c0_4 = arith.constant 0 : index
    %c0_5 = arith.constant 0 : index
    %5 = vector.load %arg3[%c0_4, %c0_5] : memref<256x128xf32, #tpu.memory_space<vmem>>, vector<256x128xf32>
    tpu.vector_store %arg3[%c0_4, %c0_5], %4 {strides = array<i32>} : memref<256x128xf32, #tpu.memory_space<vmem>>, vector<256x128xf32>,
    return
  }
  func.func @transform_0(%arg0: i32) -> (i32, i32) {
    %c0_i32 = arith.constant 0 : i32
    %c0_i32_0 = arith.constant 0 : i32
    return %arg0, %c0_i32 : i32, i32
  }
  func.func @transform_1(%arg0: i32) -> (i32, i32) {
    %c0_i32 = arith.constant 0 : i32
    %c0_i32_0 = arith.constant 0 : i32
    %c0_i32_1 = arith.constant 0 : i32
    return %c0_i32, %c0_i32_0 : i32, i32
  }
  func.func @transform_2(%arg0: i32) -> (i32, i32) {
    %c0_i32 = arith.constant 0 : i32
    %c0_i32_0 = arith.constant 0 : i32
    return %arg0, %c0_i32 : i32, i32
  }
}

</mosaic_0001>

<llo_original>
// kernel: tpu_custom_call.1
$region0: #{tpu_custom_call.1}
  #allocation0 [shape = 'u32[]', space=smem, size = 0x4, offset = 0x4, fixed_abs, tag = 'smem constant byte address 0x4 - core index']
  #allocation1 [shape = 'u32[144,128]{1,0:T(1,128)}', space=vmem, size = 0x12000, scoped, tag = 'internal scratch']
  %s0 = inlined_call_operand.hbm [shape: f32[1024,128], index: 0, kind: input, shape index: {}]
  %s1 = inlined_call_operand.hbm [shape: f32[128,128], index: 1, kind: input, shape index: {}]
  %s2 = inlined_call_operand.hbm [shape: f32[1024,128], index: 2, kind: output, shape index: {}]
  %s3 = sld [smem:[#allocation0]]
  $region49: #{tpu_custom_call.1} parent=0
    _
  %s5 = ssub.s32 1, %s3
  %s6 = scalar_select 0, %s5, %s3
  $region1: #{tpu_custom_call.1} parent=0
    #allocation2 [shape = 'u8[262144]{0}', space=vmem, size = 0x40000, scoped, tag = 'input window, operand 0']
    #allocation3 [shape = 's32[2]{0}', space=sflag, size = 0x8, scoped, tag = 'scoped memory for tpu_custom_call.1']
    #allocation4 [shape = 's32[2]{0}', space=sflag, size = 0x8, scoped, tag = 'scoped memory for tpu_custom_call.1']
    #allocation5 [shape = 'u8[65536]{0}', space=vmem, size = 0x10000, scoped, tag = 'input window, operand 1, single buffered']
    #allocation6 [shape = 's32[1]{0}', space=sflag, size = 0x4, scoped, tag = 'scoped memory for tpu_custom_call.1']
    #allocation7 [shape = 'u8[262144]{0}', space=vmem, size = 0x40000, scoped, tag = 'output window, operand 0']
    %7 = vsyncpa [#allocation3], 0
    %s8 = scalar_lea.sflag [#allocation3], 1
    %9 = vsyncpa %s8, 0
    %10 = vsyncpa [#allocation6], 0
    %11 = vsyncpa [#allocation4], 0
    %s12 = scalar_lea.sflag [#allocation4], 1
    %13 = vsyncpa %s12, 0
    loop: start=0, step=1, limit=6
    $region2: #{tpu_custom_call.1} parent=1 // loop_pre_header
      _
    $region3: #{tpu_custom_call.1} parent=1 // loop_header
      %s15 = sphi 0, %s19
      %p16 = scmp.ge.s32.totalorder %s15, 6
      %s25 = sphi 0, %s27
      %s28 = sphi 0, %s25
      %s29 = sphi 0, %s28
      %s45 = sphi 0, %s29
      %s49 = sphi 0, %s49
      %s51 = sphi 0, %s49
      %s52 = sphi 0, %s51
      %s66 = sphi 0, %s52
      %s72 = sphi 0, %s74
      %s75 = sphi 0, %s72
      %s76 = sphi 0, %s75
      %s92 = sphi 0, %s76
    $region4: #{tpu_custom_call.1} parent=1 // loop_header_branch
      %18 = sbr.rel (%p16) target = $region8
    $region5: #{tpu_custom_call.1} parent=1 // loop_body
      %s20 = ssub.s32 %s15, 1
      %s21 = ssub.s32 %s15, 2
      %s22 = sadd.s32 %s15, 1
      %s23 = ssub.s32 %s15, %s22
      %p24 = scmp.eq.s32.totalorder %s23, 0
      %s26 = sadd.s32 %s25, 1
      %s27 = scalar_select %p24, %s25, %s26
      %p30 = pneg %p24
      %p31 = scmp.eq.s32.totalorder %s15, 3
      %p32 = por %p30, %p31
      %p33 = scmp.ne.s32.totalorder %s25, %s28
      %p34 = scmp.eq.s32.totalorder %s15, 0
      %p35 = por %p33, %p34
      %p36 = scmp.ne.s32.totalorder %s25, %s28
      %p37 = scmp.eq.s32.totalorder %s20, 3
      %p38 = por %p36, %p37
      %p39 = scmp.ne.s32.totalorder %s28, %s29
      %p40 = scmp.eq.s32.totalorder %s20, 0
      %p41 = por %p39, %p40
      %p42 = scmp.ne.s32.totalorder %s28, %s29
      %p43 = scmp.eq.s32.totalorder %s21, 3
      %p44 = por %p42, %p43
      %p46 = scmp.ne.s32.totalorder %s29, %s45
      %p47 = scmp.eq.s32.totalorder %s21, 0
      %p48 = por %p46, %p47
      %s50 = sadd.s32 %s49, 1
      %p53 = scmp.eq.s32.totalorder %s15, 3
      %p54 = scmp.ne.s32.totalorder %s49, %s51
      %p55 = scmp.eq.s32.totalorder %s15, 0
      %p56 = por %p54, %p55
      %p57 = scmp.ne.s32.totalorder %s49, %s51
      %p58 = scmp.eq.s32.totalorder %s20, 3
      %p59 = por %p57, %p58
      %p60 = scmp.ne.s32.totalorder %s51, %s52
      %p61 = scmp.eq.s32.totalorder %s20, 0
      %p62 = por %p60, %p61
      %p63 = scmp.ne.s32.totalorder %s51, %s52
      %p64 = scmp.eq.s32.totalorder %s21, 3
      %p65 = por %p63, %p64
      %p67 = scmp.ne.s32.totalorder %s52, %s66
      %p68 = scmp.eq.s32.totalorder %s21, 0
      %p69 = por %p67, %p68
      %s70 = ssub.s32 %s15, %s22
      %p71 = scmp.eq.s32.totalorder %s70, 0
      %s73 = sadd.s32 %s72, 1
      %s74 = scalar_select %p71, %s72, %s73
      %p77 = pneg %p71
      %p78 = scmp.eq.s32.totalorder %s15, 3
      %p79 = por %p77, %p78
      %p80 = scmp.ne.s32.totalorder %s72, %s75
      %p81 = scmp.eq.s32.totalorder %s15, 0
      %p82 = por %p80, %p81
      %p83 = scmp.ne.s32.totalorder %s72, %s75
      %p84 = scmp.eq.s32.totalorder %s20, 3
      %p85 = por %p83, %p84
      %p86 = scmp.ne.s32.totalorder %s75, %s76
      %p87 = scmp.eq.s32.totalorder %s20, 0
      %p88 = por %p86, %p87
      %p89 = scmp.ne.s32.totalorder %s75, %s76
      %p90 = scmp.eq.s32.totalorder %s21, 3
      %p91 = por %p89, %p90
      %p93 = scmp.ne.s32.totalorder %s76, %s92
      %p94 = scmp.eq.s32.totalorder %s21, 0
      %p95 = por %p93, %p94
      %p96 = scmp.le.s32.totalorder 1, %s15
      %p97 = scmp.lt.s32.totalorder %s15, 5
      %p98 = pnand %p96, %p97
      %p99 = pneg %p98
      // Predicated region
      $region9: #{tpu_custom_call.1} parent=5 // pred_check
        _
      $region10: #{tpu_custom_call.1} parent=5 // pred_check_branch
        %101 = sbr.rel (%p98) target = $region12
      $region11: #{tpu_custom_call.1} parent=5 // pred_region
        %s102 = ssub.s32 %s15, 1
        // Predicated region
        $region13: #{tpu_custom_call.1} parent=11 // pred_check
          %p103 = pneg %p62
        $region14: #{tpu_custom_call.1} parent=11 // pred_check_branch
          %105 = sbr.rel (%p103) target = $region16
        $region15: #{tpu_custom_call.1} parent=11 // pred_region
          %s107 = ssub.s32 2048, 2048
          %108 = vsyncadd [#allocation6], %s107
          %s109 = sshll.u32 [#allocation5], 4
          %s110 = int_to_ptr.vmem [resolvable:$true] %s109
          %115 = dma.hbm_to_vmem [thread:$0]  %s1, 2048, %s110, [#allocation6], 128, 128, 8
        $region16: #{tpu_custom_call.1} parent=11 // pred_fallthru
          _
      $region12: #{tpu_custom_call.1} parent=5 // pred_fallthru
        _
      %p116 = scmp.lt.s32.totalorder %s15, 4
      // Predicated region
      $region17: #{tpu_custom_call.1} parent=5 // pred_check
        %p117 = pneg %p116
      $region18: #{tpu_custom_call.1} parent=5 // pred_check_branch
        %119 = sbr.rel (%p117) target = $region20
      $region19: #{tpu_custom_call.1} parent=5 // pred_region
        // Predicated region
        $region21: #{tpu_custom_call.1} parent=19 // pred_check
          %p120 = pneg %p35
        $region22: #{tpu_custom_call.1} parent=19 // pred_check_branch
          %122 = sbr.rel (%p120) target = $region24
        $region23: #{tpu_custom_call.1} parent=19 // pred_region
          %s123 = sand.u32 %s25, 1
          %s124 = scalar_lea.sflag [#allocation3], %s123
          %s125 = sand.u32 %s25, 1
          %s126 = smul.addr %s125, 256
          %s127 = scalar_lea.vmem [#allocation2], %s126
          %s128 = smul.u32 32, %s15
          %s130 = ssub.s32 4096, 4096
          %131 = vsyncadd %s124, %s130
          %s132 = smul.addr %s128, 128
          %s133 = scalar_lea.hbm %s0, %s132
          %s134 = sshll.u32 %s127, 4
          %s135 = int_to_ptr.vmem [resolvable:$true] %s134
          %140 = dma.hbm_to_vmem [thread:$0]  %s133, 4096, %s135, %s124, 128, 128, 8
        $region24: #{tpu_custom_call.1} parent=19 // pred_fallthru
          _
      $region20: #{tpu_custom_call.1} parent=5 // pred_fallthru
        _
      %p141 = scmp.le.s32.totalorder 1, %s15
      %p142 = scmp.lt.s32.totalorder %s15, 5
      %p143 = pnand %p141, %p142
      %p144 = pneg %p143
      // Predicated region
      $region25: #{tpu_custom_call.1} parent=5 // pred_check
        _
      $region26: #{tpu_custom_call.1} parent=5 // pred_check_branch
        %146 = sbr.rel (%p143) target = $region28
      $region27: #{tpu_custom_call.1} parent=5 // pred_region
        %s147 = ssub.s32 %s15, 1
        %s148 = sand.u32 %s28, 1
        %s149 = scalar_lea.sflag [#allocation3], %s148
        %s150 = sand.u32 %s28, 1
        %s151 = smul.addr %s150, 256
        %s152 = scalar_lea.vmem [#allocation2], %s151
        // Predicated region
        $region29: #{tpu_custom_call.1} parent=27 // pred_check
          %p153 = pneg %p41
        $region30: #{tpu_custom_call.1} parent=27 // pred_check_branch
          %155 = sbr.rel (%p153) target = $region32
        $region31: #{tpu_custom_call.1} parent=27 // pred_region
          %156 = dma.done %s149, 4096
        $region32: #{tpu_custom_call.1} parent=27 // pred_fallthru
          _
        // Predicated region
        $region33: #{tpu_custom_call.1} parent=27 // pred_check
          %p157 = pneg %p62
        $region34: #{tpu_custom_call.1} parent=27 // pred_check_branch
          %159 = sbr.rel (%p157) target = $region36
        $region35: #{tpu_custom_call.1} parent=27 // pred_region
          %160 = dma.done [#allocation6], 2048
        $region36: #{tpu_custom_call.1} parent=27 // pred_fallthru
          _
        %s161 = sand.u32 %s28, 1
        %s162 = scalar_lea.sflag [#allocation3], %s161
        %s163 = sand.u32 %s28, 1
        %s164 = smul.addr %s163, 256
        %s165 = scalar_lea.vmem [#allocation2], %s164
        %p166 = pneg %p41
        %p167 = pneg %p38
        %p168 = pneg %p62
        %p169 = pneg %p59
        %p170 = pneg %p88
        %p171 = pneg %p85
        %s172 = sand.u32 %s75, 1
        %s173 = scalar_lea.sflag [#allocation4], %s172
        %s174 = sand.u32 %s75, 1
        %s175 = smul.addr %s174, 256
        %s176 = scalar_lea.vmem [#allocation7], %s175
        %s177 = smul.u32 32, %s20
        %s178 = smul.u32 32, %s20
        %v179 = vld [vmem:[%s152] sm:$0xff]
        %v180 = vld [vmem:[%s152 + $0x8] sm:$0xff]
        %v181 = vld [vmem:[%s152 + $0x10] sm:$0xff]
        %v182 = vld [vmem:[%s152 + $0x18] sm:$0xff]
        %v183 = vld [vmem:[%s152 + $0x20] sm:$0xff]
        %v184 = vld [vmem:[%s152 + $0x28] sm:$0xff]
        %v185 = vld [vmem:[%s152 + $0x30] sm:$0xff]
        %v186 = vld [vmem:[%s152 + $0x38] sm:$0xff]
        %v187 = vld [vmem:[%s152 + $0x40] sm:$0xff]
        %v188 = vld [vmem:[%s152 + $0x48] sm:$0xff]
        %v189 = vld [vmem:[%s152 + $0x50] sm:$0xff]
        %v190 = vld [vmem:[%s152 + $0x58] sm:$0xff]
        %v191 = vld [vmem:[%s152 + $0x60] sm:$0xff]
        %v192 = vld [vmem:[%s152 + $0x68] sm:$0xff]
        %v193 = vld [vmem:[%s152 + $0x70] sm:$0xff]
        %v194 = vld [vmem:[%s152 + $0x78] sm:$0xff]
        %v195 = vld [vmem:[%s152 + $0x80] sm:$0xff]
        %v196 = vld [vmem:[%s152 + $0x88] sm:$0xff]
        %v197 = vld [vmem:[%s152 + $0x90] sm:$0xff]
        %v198 = vld [vmem:[%s152 + $0x98] sm:$0xff]
        %v199 = vld [vmem:[%s152 + $0xa0] sm:$0xff]
        %v200 = vld [vmem:[%s152 + $0xa8] sm:$0xff]
        %v201 = vld [vmem:[%s152 + $0xb0] sm:$0xff]
        %v202 = vld [vmem:[%s152 + $0xb8] sm:$0xff]
        %v203 = vld [vmem:[%s152 + $0xc0] sm:$0xff]
        %v204 = vld [vmem:[%s152 + $0xc8] sm:$0xff]
        %v205 = vld [vmem:[%s152 + $0xd0] sm:$0xff]
        %v206 = vld [vmem:[%s152 + $0xd8] sm:$0xff]
        %v207 = vld [vmem:[%s152 + $0xe0] sm:$0xff]
        %v208 = vld [vmem:[%s152 + $0xe8] sm:$0xff]
        %v209 = vld [vmem:[%s152 + $0xf0] sm:$0xff]
        %v210 = vld [vmem:[%s152 + $0xf8] sm:$0xff]
        %v211 = vsub.f32 %v179, 128.0
        %v212 = vsub.f32 %v180, 128.0
        %v213 = vsub.f32 %v181, 128.0
        %v214 = vsub.f32 %v182, 128.0
        %v215 = vsub.f32 %v183, 128.0
        %v216 = vsub.f32 %v184, 128.0
        %v217 = vsub.f32 %v185, 128.0
        %v218 = vsub.f32 %v186, 128.0
        %v219 = vsub.f32 %v187, 128.0
        %v220 = vsub.f32 %v188, 128.0
        %v221 = vsub.f32 %v189, 128.0
        %v222 = vsub.f32 %v190, 128.0
        %v223 = vsub.f32 %v191, 128.0
        %v224 = vsub.f32 %v192, 128.0
        %v225 = vsub.f32 %v193, 128.0
        %v226 = vsub.f32 %v194, 128.0
        %v227 = vsub.f32 %v195, 128.0
        %v228 = vsub.f32 %v196, 128.0
        %v229 = vsub.f32 %v197, 128.0
        %v230 = vsub.f32 %v198, 128.0
        %v231 = vsub.f32 %v199, 128.0
        %v232 = vsub.f32 %v200, 128.0
        %v233 = vsub.f32 %v201, 128.0
        %v234 = vsub.f32 %v202, 128.0
        %v235 = vsub.f32 %v203, 128.0
        %v236 = vsub.f32 %v204, 128.0
        %v237 = vsub.f32 %v205, 128.0
        %v238 = vsub.f32 %v206, 128.0
        %v239 = vsub.f32 %v207, 128.0
        %v240 = vsub.f32 %v208, 128.0
        %v241 = vsub.f32 %v209, 128.0
        %v242 = vsub.f32 %v210, 128.0
        %v243 = vld [vmem:[#allocation5] sm:$0xff]
        %v244 = vld [vmem:[#allocation5 + $0x8] sm:$0xff]
        %v245 = vld [vmem:[#allocation5 + $0x10] sm:$0xff]
        %v246 = vld [vmem:[#allocation5 + $0x18] sm:$0xff]
        %v247 = vld [vmem:[#allocation5 + $0x20] sm:$0xff]
        %v248 = vld [vmem:[#allocation5 + $0x28] sm:$0xff]
        %v249 = vld [vmem:[#allocation5 + $0x30] sm:$0xff]
        %v250 = vld [vmem:[#allocation5 + $0x38] sm:$0xff]
        %v251 = vld [vmem:[#allocation5 + $0x40] sm:$0xff]
        %v252 = vld [vmem:[#allocation5 + $0x48] sm:$0xff]
        %v253 = vld [vmem:[#allocation5 + $0x50] sm:$0xff]
        %v254 = vld [vmem:[#allocation5 + $0x58] sm:$0xff]
        %v255 = vld [vmem:[#allocation5 + $0x60] sm:$0xff]
        %v256 = vld [vmem:[#allocation5 + $0x68] sm:$0xff]
        %v257 = vld [vmem:[#allocation5 + $0x70] sm:$0xff]
        %v258 = vld [vmem:[#allocation5 + $0x78] sm:$0xff]
        %259 = vmatprep.subr.mxu0 0.0
        %260 = vmatpush1.msra.mxu0 %v258
        %261 = vmatprep.subr.mxu0 0.0
        %262 = vmatpush1.msra.mxu0 %v257
        %263 = vmatprep.subr.mxu0 0.0
        %264 = vmatpush1.msra.mxu0 %v256
        %265 = vmatprep.subr.mxu0 0.0
        %266 = vmatpush1.msra.mxu0 %v255
        %267 = vmatprep.subr.mxu0 0.0
        %268 = vmatpush1.msra.mxu0 %v254
        %269 = vmatprep.subr.mxu0 0.0
        %270 = vmatpush1.msra.mxu0 %v253
        %271 = vmatprep.subr.mxu0 0.0
        %272 = vmatpush1.msra.mxu0 %v252
        %273 = vmatprep.subr.mxu0 0.0
        %274 = vmatpush1.msra.mxu0 %v251
        %275 = vmatprep.subr.mxu0 0.0
        %276 = vmatpush1.msra.mxu0 %v250
        %277 = vmatprep.subr.mxu0 0.0
        %278 = vmatpush1.msra.mxu0 %v249
        %279 = vmatprep.subr.mxu0 0.0
        %280 = vmatpush1.msra.mxu0 %v248
        %281 = vmatprep.subr.mxu0 0.0
        %282 = vmatpush1.msra.mxu0 %v247
        %283 = vmatprep.subr.mxu0 0.0
        %284 = vmatpush1.msra.mxu0 %v246
        %285 = vmatprep.subr.mxu0 0.0
        %286 = vmatpush1.msra.mxu0 %v245
        %287 = vmatprep.subr.mxu0 0.0
        %288 = vmatpush1.msra.mxu0 %v244
        %289 = vmatprep.subr.mxu0 0.0
        %290 = vmatpush1.msra.mxu0 %v243
        %291 = vmatprep.subr.mxu0 0.0
        %292 = vmatpush2.msra.mxu0 0.0
        %293 = vmatprep.subr.mxu0 0.0
        %294 = vmatpush2.msra.mxu0 0.0
        %295 = vmatprep.subr.mxu0 0.0
        %296 = vmatpush2.msra.mxu0 0.0
        %297 = vmatprep.subr.mxu0 0.0
        %298 = vmatpush2.msra.mxu0 0.0
        %299 = vmatprep.subr.mxu0 0.0
        %300 = vmatpush2.msra.mxu0 0.0
        %301 = vmatprep.subr.mxu0 0.0
        %302 = vmatpush2.msra.mxu0 0.0
        %303 = vmatprep.subr.mxu0 0.0
        %304 = vmatpush2.msra.mxu0 0.0
        %305 = vmatprep.subr.mxu0 0.0
        %306 = vmatpush2.msra.mxu0 0.0
        %307 = vmatprep.subr.mxu0 0.0
        %308 = vmatpush2.msra.mxu0 0.0
        %309 = vmatprep.subr.mxu0 0.0
        %310 = vmatpush2.msra.mxu0 0.0
        %311 = vmatprep.subr.mxu0 0.0
        %312 = vmatpush2.msra.mxu0 0.0
        %313 = vmatprep.subr.mxu0 0.0
        %314 = vmatpush2.msra.mxu0 0.0
        %315 = vmatprep.subr.mxu0 0.0
        %316 = vmatpush2.msra.mxu0 0.0
        %317 = vmatprep.subr.mxu0 0.0
        %318 = vmatpush2.msra.mxu0 0.0
        %319 = vmatprep.subr.mxu0 0.0
        %320 = vmatpush2.msra.mxu0 0.0
        %321 = vmatprep.subr.mxu0 0.0
        %322 = vmatpush2.msra.mxu0 0.0
        %323 = vmatprep.mubr.f32.mxu0 0.0
        %324 = vmatmul.mubr.f32.gmra.mxu0 %v211
        %v325 = vpop.f32.mrf.mxu0
        %v326 = vadd.f32 0.0, %v325
        %v327 = vpop.f32.mrf.mxu0
        %328 = vmatprep.mubr.f32.mxu0 0.0
        %329 = vmatmul.mubr.f32.gmra.mxu0 %v212
        %v330 = vpop.f32.mrf.mxu0
        %v331 = vadd.f32 0.0, %v330
        %v332 = vpop.f32.mrf.mxu0
        %333 = vmatprep.mubr.f32.mxu0 0.0
        %334 = vmatmul.mubr.f32.gmra.mxu0 %v213
        %v335 = vpop.f32.mrf.mxu0
        %v336 = vadd.f32 0.0, %v335
        %v337 = vpop.f32.mrf.mxu0
        %338 = vmatprep.mubr.f32.mxu0 0.0
        %339 = vmatmul.mubr.f32.gmra.mxu0 %v214
        %v340 = vpop.f32.mrf.mxu0
        %v341 = vadd.f32 0.0, %v340
        %v342 = vpop.f32.mrf.mxu0
        %343 = vmatprep.mubr.f32.mxu0 0.0
        %344 = vmatmul.mubr.f32.gmra.mxu0 %v215
        %v345 = vpop.f32.mrf.mxu0
        %v346 = vadd.f32 0.0, %v345
        %v347 = vpop.f32.mrf.mxu0
        %348 = vmatprep.mubr.f32.mxu0 0.0
        %349 = vmatmul.mubr.f32.gmra.mxu0 %v216
        %v350 = vpop.f32.mrf.mxu0
        %v351 = vadd.f32 0.0, %v350
        %v352 = vpop.f32.mrf.mxu0
        %353 = vmatprep.mubr.f32.mxu0 0.0
        %354 = vmatmul.mubr.f32.gmra.mxu0 %v217
        %v355 = vpop.f32.mrf.mxu0
        %v356 = vadd.f32 0.0, %v355
        %v357 = vpop.f32.mrf.mxu0
        %358 = vmatprep.mubr.f32.mxu0 0.0
        %359 = vmatmul.mubr.f32.gmra.mxu0 %v218
        %v360 = vpop.f32.mrf.mxu0
        %v361 = vadd.f32 0.0, %v360
        %v362 = vpop.f32.mrf.mxu0
        %363 = vmatprep.mubr.f32.mxu0 0.0
        %364 = vmatmul.mubr.f32.gmra.mxu0 %v219
        %v365 = vpop.f32.mrf.mxu0
        %v366 = vadd.f32 0.0, %v365
        %v367 = vpop.f32.mrf.mxu0
        %368 = vmatprep.mubr.f32.mxu0 0.0
        %369 = vmatmul.mubr.f32.gmra.mxu0 %v220
        %v370 = vpop.f32.mrf.mxu0
        %v371 = vadd.f32 0.0, %v370
        %v372 = vpop.f32.mrf.mxu0
        %373 = vmatprep.mubr.f32.mxu0 0.0
        %374 = vmatmul.mubr.f32.gmra.mxu0 %v221
        %v375 = vpop.f32.mrf.mxu0
        %v376 = vadd.f32 0.0, %v375
        %v377 = vpop.f32.mrf.mxu0
        %378 = vmatprep.mubr.f32.mxu0 0.0
        %379 = vmatmul.mubr.f32.gmra.mxu0 %v222
        %v380 = vpop.f32.mrf.mxu0
        %v381 = vadd.f32 0.0, %v380
        %v382 = vpop.f32.mrf.mxu0
        %383 = vmatprep.mubr.f32.mxu0 0.0
        %384 = vmatmul.mubr.f32.gmra.mxu0 %v223
        %v385 = vpop.f32.mrf.mxu0
        %v386 = vadd.f32 0.0, %v385
        %v387 = vpop.f32.mrf.mxu0
        %388 = vmatprep.mubr.f32.mxu0 0.0
        %389 = vmatmul.mubr.f32.gmra.mxu0 %v224
        %v390 = vpop.f32.mrf.mxu0
        %v391 = vadd.f32 0.0, %v390
        %v392 = vpop.f32.mrf.mxu0
        %393 = vmatprep.mubr.f32.mxu0 0.0
        %394 = vmatmul.mubr.f32.gmra.mxu0 %v225
        %v395 = vpop.f32.mrf.mxu0
        %v396 = vadd.f32 0.0, %v395
        %v397 = vpop.f32.mrf.mxu0
        %398 = vmatprep.mubr.f32.mxu0 0.0
        %399 = vmatmul.mubr.f32.gmra.mxu0 %v226
        %v400 = vpop.f32.mrf.mxu0
        %v401 = vadd.f32 0.0, %v400
        %v402 = vpop.f32.mrf.mxu0
        %403 = vmatprep.mubr.f32.mxu0 0.0
        %404 = vmatmul.mubr.f32.gmra.mxu0 %v227
        %v405 = vpop.f32.mrf.mxu0
        %v406 = vadd.f32 0.0, %v405
        %v407 = vpop.f32.mrf.mxu0
        %408 = vmatprep.mubr.f32.mxu0 0.0
        %409 = vmatmul.mubr.f32.gmra.mxu0 %v228
        %v410 = vpop.f32.mrf.mxu0
        %v411 = vadd.f32 0.0, %v410
        %v412 = vpop.f32.mrf.mxu0
        %413 = vmatprep.mubr.f32.mxu0 0.0
        %414 = vmatmul.mubr.f32.gmra.mxu0 %v229
        %v415 = vpop.f32.mrf.mxu0
        %v416 = vadd.f32 0.0, %v415
        %v417 = vpop.f32.mrf.mxu0
        %418 = vmatprep.mubr.f32.mxu0 0.0
        %419 = vmatmul.mubr.f32.gmra.mxu0 %v230
        %v420 = vpop.f32.mrf.mxu0
        %v421 = vadd.f32 0.0, %v420
        %v422 = vpop.f32.mrf.mxu0
        %423 = vmatprep.mubr.f32.mxu0 0.0
        %424 = vmatmul.mubr.f32.gmra.mxu0 %v231
        %v425 = vpop.f32.mrf.mxu0
        %v426 = vadd.f32 0.0, %v425
        %v427 = vpop.f32.mrf.mxu0
        %428 = vmatprep.mubr.f32.mxu0 0.0
        %429 = vmatmul.mubr.f32.gmra.mxu0 %v232
        %v430 = vpop.f32.mrf.mxu0
        %v431 = vadd.f32 0.0, %v430
        %v432 = vpop.f32.mrf.mxu0
        %433 = vmatprep.mubr.f32.mxu0 0.0
        %434 = vmatmul.mubr.f32.gmra.mxu0 %v233
        %v435 = vpop.f32.mrf.mxu0
        %v436 = vadd.f32 0.0, %v435
        %v437 = vpop.f32.mrf.mxu0
        %438 = vmatprep.mubr.f32.mxu0 0.0
        %439 = vmatmul.mubr.f32.gmra.mxu0 %v234
        %v440 = vpop.f32.mrf.mxu0
        %v441 = vadd.f32 0.0, %v440
        %v442 = vpop.f32.mrf.mxu0
        %443 = vmatprep.mubr.f32.mxu0 0.0
        %444 = vmatmul.mubr.f32.gmra.mxu0 %v235
        %v445 = vpop.f32.mrf.mxu0
        %v446 = vadd.f32 0.0, %v445
        %v447 = vpop.f32.mrf.mxu0
        %448 = vmatprep.mubr.f32.mxu0 0.0
        %449 = vmatmul.mubr.f32.gmra.mxu0 %v236
        %v450 = vpop.f32.mrf.mxu0
        %v451 = vadd.f32 0.0, %v450
        %v452 = vpop.f32.mrf.mxu0
        %453 = vmatprep.mubr.f32.mxu0 0.0
        %454 = vmatmul.mubr.f32.gmra.mxu0 %v237
        %v455 = vpop.f32.mrf.mxu0
        %v456 = vadd.f32 0.0, %v455
        %v457 = vpop.f32.mrf.mxu0
        %458 = vmatprep.mubr.f32.mxu0 0.0
        %459 = vmatmul.mubr.f32.gmra.mxu0 %v238
        %v460 = vpop.f32.mrf.mxu0
        %v461 = vadd.f32 0.0, %v460
        %v462 = vpop.f32.mrf.mxu0
        %463 = vmatprep.mubr.f32.mxu0 0.0
        %464 = vmatmul.mubr.f32.gmra.mxu0 %v239
        %v465 = vpop.f32.mrf.mxu0
        %v466 = vadd.f32 0.0, %v465
        %v467 = vpop.f32.mrf.mxu0
        %468 = vmatprep.mubr.f32.mxu0 0.0
        %469 = vmatmul.mubr.f32.gmra.mxu0 %v240
        %v470 = vpop.f32.mrf.mxu0
        %v471 = vadd.f32 0.0, %v470
        %v472 = vpop.f32.mrf.mxu0
        %473 = vmatprep.mubr.f32.mxu0 0.0
        %474 = vmatmul.mubr.f32.gmra.mxu0 %v241
        %v475 = vpop.f32.mrf.mxu0
        %v476 = vadd.f32 0.0, %v475
        %v477 = vpop.f32.mrf.mxu0
        %478 = vmatprep.mubr.f32.mxu0 0.0
        %479 = vmatmul.mubr.f32.gmra.mxu0 %v242
        %v480 = vpop.f32.mrf.mxu0
        %v481 = vadd.f32 0.0, %v480
        %v482 = vpop.f32.mrf.mxu0
        %483 = vdwg.mxu0
        %484 = vst [vmem:[%s176] sm:$0xff] %v326
        %485 = vst [vmem:[%s176 + $0x8] sm:$0xff] %v331
        %486 = vst [vmem:[%s176 + $0x10] sm:$0xff] %v336
        %487 = vst [vmem:[%s176 + $0x18] sm:$0xff] %v341
        %488 = vst [vmem:[%s176 + $0x20] sm:$0xff] %v346
        %489 = vst [vmem:[%s176 + $0x28] sm:$0xff] %v351
        %490 = vst [vmem:[%s176 + $0x30] sm:$0xff] %v356
        %491 = vst [vmem:[%s176 + $0x38] sm:$0xff] %v361
        %492 = vst [vmem:[%s176 + $0x40] sm:$0xff] %v366
        %493 = vst [vmem:[%s176 + $0x48] sm:$0xff] %v371
        %494 = vst [vmem:[%s176 + $0x50] sm:$0xff] %v376
        %495 = vst [vmem:[%s176 + $0x58] sm:$0xff] %v381
        %496 = vst [vmem:[%s176 + $0x60] sm:$0xff] %v386
        %497 = vst [vmem:[%s176 + $0x68] sm:$0xff] %v391
        %498 = vst [vmem:[%s176 + $0x70] sm:$0xff] %v396
        %499 = vst [vmem:[%s176 + $0x78] sm:$0xff] %v401
        %500 = vst [vmem:[%s176 + $0x80] sm:$0xff] %v406
        %501 = vst [vmem:[%s176 + $0x88] sm:$0xff] %v411
        %502 = vst [vmem:[%s176 + $0x90] sm:$0xff] %v416
        %503 = vst [vmem:[%s176 + $0x98] sm:$0xff] %v421
        %504 = vst [vmem:[%s176 + $0xa0] sm:$0xff] %v426
        %505 = vst [vmem:[%s176 + $0xa8] sm:$0xff] %v431
        %506 = vst [vmem:[%s176 + $0xb0] sm:$0xff] %v436
        %507 = vst [vmem:[%s176 + $0xb8] sm:$0xff] %v441
        %508 = vst [vmem:[%s176 + $0xc0] sm:$0xff] %v446
        %509 = vst [vmem:[%s176 + $0xc8] sm:$0xff] %v451
        %510 = vst [vmem:[%s176 + $0xd0] sm:$0xff] %v456
        %511 = vst [vmem:[%s176 + $0xd8] sm:$0xff] %v461
        %512 = vst [vmem:[%s176 + $0xe0] sm:$0xff] %v466
        %513 = vst [vmem:[%s176 + $0xe8] sm:$0xff] %v471
        %514 = vst [vmem:[%s176 + $0xf0] sm:$0xff] %v476
        %515 = vst [vmem:[%s176 + $0xf8] sm:$0xff] %v481
        %s516 = sand.u32 %s75, 1
        %s517 = scalar_lea.sflag [#allocation4], %s516
        %s518 = sand.u32 %s75, 1
        %s519 = smul.addr %s518, 256
        %s520 = scalar_lea.vmem [#allocation7], %s519
        // Predicated region
        $region37: #{tpu_custom_call.1} parent=27 // pred_check
          %p521 = pneg %p85
        $region38: #{tpu_custom_call.1} parent=27 // pred_check_branch
          %523 = sbr.rel (%p521) target = $region40
        $region39: #{tpu_custom_call.1} parent=27 // pred_region
          %s524 = smul.u32 32, %s20
          %s526 = ssub.s32 4096, 4096
          %527 = vsyncadd %s517, %s526
          %s528 = smul.addr %s524, 128
          %s529 = scalar_lea.hbm %s2, %s528
          %s530 = sshll.u32 %s520, 4
          %s531 = int_to_ptr.vmem [resolvable:$true] %s530
          %536 = dma.vmem_to_hbm [thread:$0]  %s531, 4096, %s529, %s517, 128, 128, 8
        $region40: #{tpu_custom_call.1} parent=27 // pred_fallthru
          _
      $region28: #{tpu_custom_call.1} parent=5 // pred_fallthru
        _
      %p537 = scmp.le.s32.totalorder 2, %s15
      // Predicated region
      $region41: #{tpu_custom_call.1} parent=5 // pred_check
        %p538 = pneg %p537
      $region42: #{tpu_custom_call.1} parent=5 // pred_check_branch
        %540 = sbr.rel (%p538) target = $region44
      $region43: #{tpu_custom_call.1} parent=5 // pred_region
        %s541 = ssub.s32 %s15, 2
        // Predicated region
        $region45: #{tpu_custom_call.1} parent=43 // pred_check
          %p542 = pneg %p91
        $region46: #{tpu_custom_call.1} parent=43 // pred_check_branch
          %544 = sbr.rel (%p542) target = $region48
        $region47: #{tpu_custom_call.1} parent=43 // pred_region
          %s545 = sand.u32 %s76, 1
          %s546 = scalar_lea.sflag [#allocation4], %s545
          %s547 = sand.u32 %s76, 1
          %s548 = smul.addr %s547, 256
          %s549 = scalar_lea.vmem [#allocation7], %s548
          %550 = dma.done %s546, 4096
        $region48: #{tpu_custom_call.1} parent=43 // pred_fallthru
          _
      $region44: #{tpu_custom_call.1} parent=5 // pred_fallthru
        _
    $region6: #{tpu_custom_call.1} parent=1 // loop_footer
      %s19 = sadd.s32 1, %s15
    $region7: #{tpu_custom_call.1} parent=1 // loop_footer_branch
      %14 = sbr.rel target = $region3
    $region8: #{tpu_custom_call.1} parent=1 // loop_exit
      _
    %551 = vsyncpa [#allocation3], 1
    %s552 = scalar_lea.sflag [#allocation3], 1
    %553 = vsyncpa %s552, 1
    %554 = vsyncpa [#allocation6], 1
    %555 = vsyncpa [#allocation4], 1
    %s556 = scalar_lea.sflag [#allocation4], 1
    %557 = vsyncpa %s556, 1

</llo_original>
